<compile_context>
chip_gen: v6e
topology: v6e:2x2x1
jax: 0.10.0
libtpu: 0.0.40
codegen_flags: <defaults>
</compile_context>

<pallas_src>
import functools

import jax
import jax.numpy as jnp
import numpy as np
from jax.experimental import pallas as pl
from jax.experimental.pallas import tpu as pltpu


# ----------------------------- kernel ----------------------------------------

def _fused_async_attn_kernel(x_ref, w_ref, b_ref, o_ref, *,
                             n_heads, head_dim, unified_max_value):
    """One fused tile: qkv projection + per-position head attention.

    x_ref: (TR, dim)      input positions on the sublane axis
    w_ref: (3*dim, dim)   row-permuted torch Linear weight ([Q|K|V] row blocks)
    b_ref: (3*dim, 1)     row-permuted bias
    o_ref: (dim, TR)      output, positions on the lane axis (lane-dense store)
    """
    dim = n_heads * head_dim

    # MXU projection in native dtype; f32 accumulate.  Positions -> lanes.
    qkv_t = jax.lax.dot_general(
        w_ref[...], x_ref[...], (((1,), (1,)), ((), ())),
        preferred_element_type=jnp.float32)
    qkv_t = qkv_t + b_ref[...].astype(jnp.float32)                 # (3*dim, TR)

    q_t = qkv_t[0 * dim:1 * dim, :]                                # (H*Dh, TR)
    k_t = qkv_t[1 * dim:2 * dim, :]
    v_t = qkv_t[2 * dim:3 * dim, :]

    umax = jnp.float32(unified_max_value)
    tr = q_t.shape[1]

    if n_heads <= 8:
        # Fully-unrolled H x H attention: dense (Dh, TR)/(1, TR) VPU+EUP work.
        for n in range(n_heads):
            qn = q_t[n * head_dim:(n + 1) * head_dim, :]              # (Dh, TR)
            exps = []
            for m in range(n_heads):
                km = k_t[m * head_dim:(m + 1) * head_dim, :]          # (Dh, TR)
                sub = jnp.sum(qn * km, axis=0, keepdims=True) - umax  # (1, TR)
                e = jnp.exp(sub)
                exps.append(jnp.where(jnp.abs(sub) > umax, jnp.float32(0.0), e))
            denom = exps[0]
            for m in range(1, n_heads):
                denom = denom + exps[m]
            inv = 1.0 / denom                                         # (1, TR)
            acc = (exps[0] * inv) * v_t[0:head_dim, :]                # (Dh, TR)
            for m in range(1, n_heads):
                acc = acc + (exps[m] * inv) * v_t[m * head_dim:(m + 1) * head_dim, :]
            # Per-head store straight into the (dim, TR) block: no concat, no
            # in-kernel transpose, TR-lane-wide store.
            o_ref[n * head_dim:(n + 1) * head_dim, :] = acc.astype(o_ref.dtype)
    else:
        # Larger head counts: bound live temps by stacking the H score rows of
        # each output head into one (H, TR) slab instead of H^2 unrolled pairs.
        k3 = k_t.reshape(n_heads, head_dim, tr)
        v3 = v_t.reshape(n_heads, head_dim, tr)
        for n in range(n_heads):
            qn = q_t[n * head_dim:(n + 1) * head_dim, :]              # (Dh, TR)
            sub = jnp.sum(k3 * qn[None, :, :], axis=1) - umax         # (H, TR)
            e = jnp.exp(sub)
            e = jnp.where(jnp.abs(sub) > umax, jnp.float32(0.0), e)
            inv = 1.0 / jnp.sum(e, axis=0, keepdims=True)             # (1, TR)
            out_n = jnp.sum(v3 * (e * inv)[:, None, :], axis=0)       # (Dh, TR)
            o_ref[n * head_dim:(n + 1) * head_dim, :] = out_n.astype(o_ref.dtype)


# ----------------------------- wrapper ----------------------------------------

def _round_up(n, m):
    return ((n + m - 1) // m) * m


def _vmem_capacity_bytes():
    try:
        cap = getattr(pltpu.get_tpu_info(), "vmem_capacity_bytes", None)
        if cap:
            return int(cap)
    except Exception:
        pass
    return 64 * 1024 * 1024            # conservative: v7x per-core VMEM


def _choose_tile_rows(rows, dim, itemsize, requested):
    """Row tile (= lane width of the output block).

    rows <= 128  -> one full-extent block (tile == rows).
    rows  > 128  -> multiple of 128 (lane-dense output stores), never larger
                    than the array, capped by a generation-aware VMEM budget
                    and by the need for >= 2 grid steps (v7x megacore).
    """
    if rows <= 128:
        return rows
    cap = _vmem_capacity_bytes()
    budget = min(cap // 2, 64 * 1024 * 1024)          # v7x ~32 MiB, v5e/v6e ~64 MiB
    fixed = (3 * dim * dim + 3 * dim) * itemsize      # resident weight + bias
    per_row = (2 * dim * itemsize                     # x, double-buffered
               + 2 * dim * itemsize                   # out, double-buffered
               + 8 * dim * 4)                         # f32 temps (qkv_t, scores, acc)
    tr = max(128, _round_up(min(requested, rows), 128))
    tr = min(tr, (rows // 128) * 128)                 # never exceed the array
    while tr > 128 and fixed + tr * per_row > budget:
        tr = max(128, (tr // 256) * 128)              # halve, keep 128-aligned
    if rows >= 256:                                   # v7x: allow >= 2 grid steps
        tr = min(tr, max(128, _round_up(pl.cdiv(rows, 2), 128)))
    return tr


def asynchronized_attention_forward(x, w_qkv, b_qkv, n_heads, unified_max_value,
                                    *, tile_rows=512):
    """Matches AsynchronizedAttention(dim, n_heads, unified_max_value)(x).

    x:      (B, S, dim)
    w_qkv:  (3*dim, dim)   torch nn.Linear weight layout (no transpose needed)
    b_qkv:  (3*dim,)
    returns (B, S, n_heads, head_dim)
    """
    B, S, dim = x.shape
    assert dim % n_heads == 0
    head_dim = dim // n_heads
    rows = B * S

    # Permute weight/bias rows ONCE so the projected rows come out as
    # [Q(dim) | K(dim) | V(dim)] with per-field row index head*Dh + d, exactly
    # reproducing torch's .view(B, S, H, 3*Dh).chunk(3, -1).
    w_r = (w_qkv.reshape(n_heads, 3, head_dim, dim)
           .transpose(1, 0, 2, 3).reshape(3 * dim, dim))
    b_r = (b_qkv.reshape(n_heads, 3, head_dim)
           .transpose(1, 0, 2).reshape(3 * dim, 1))

    x2d = x.reshape(rows, dim)                 # no jnp.pad: the tail tile relies on
    tr = _choose_tile_rows(rows, dim,          # Pallas' masked last block instead
                           x.dtype.itemsize, tile_rows)
    grid = (pl.cdiv(rows, tr),)

    # Resident weight/bias: their block index never changes, so the second
    # pipeline buffer is dead VMEM.  Single-buffer them when big enough to
    # matter (tiny configs stay on the default, maximally-compatible path).
    resident_kw = {}
    if 3 * dim * dim * w_r.dtype.itemsize >= (2 << 20) and hasattr(pl, "Buffered"):
        resident_kw = dict(pipeline_mode=pl.Buffered(1))

    fixed = (3 * dim * dim + 3 * dim) * x.dtype.itemsize
    per_row = 4 * dim * x.dtype.itemsize + 8 * dim * 4
    footprint = fixed * (1 if resident_kw else 2) + tr * per_row
    cap = _vmem_capacity_bytes()
    vmem_limit = int(min(0.85 * cap, max(32 * 1024 * 1024, 2 * footprint)))

    kern = functools.partial(_fused_async_attn_kernel,
                             n_heads=n_heads, head_dim=head_dim,
                             unified_max_value=float(unified_max_value))

    out_t = pl.pallas_call(
        kern,
        out_shape=jax.ShapeDtypeStruct((dim, rows), x.dtype),
        grid_spec=pltpu.PrefetchScalarGridSpec(
            num_scalar_prefetch=0,
            grid=grid,
            in_specs=[
                pl.BlockSpec((tr, dim), lambda i: (i, 0)),              # x rows tile
                pl.BlockSpec((3 * dim, dim), lambda i: (0, 0), **resident_kw),
                pl.BlockSpec((3 * dim, 1), lambda i: (0, 0), **resident_kw),
            ],
            # (dim, rows) output layout: lane-dense unmasked stores in-kernel;
            # the final transpose happens below where XLA can fuse it.
            out_specs=pl.BlockSpec((dim, tr), lambda i: (0, i)),
        ),
        compiler_params=pltpu.CompilerParams(
            dimension_semantics=("parallel",),
            vmem_limit_bytes=vmem_limit,
        ),
    )(x2d, w_r, b_r)

    return out_t.T.reshape(B, S, n_heads, head_dim)


# ----------------------------- pure-JAX reference ------------------------------

def reference_forward(x, w_qkv, b_qkv, n_heads, unified_max_value):
    B, S, dim = x.shape
    head_dim = dim // n_heads
    hi = jax.lax.Precision.HIGHEST           # keep the f32 reference actually f32
    qkv = jnp.einsum("bsd,ed->bse", x, w_qkv, precision=hi) + b_qkv
    qkv = qkv.reshape(B, S, n_heads, 3 * head_dim)
    q = qkv[..., :head_dim]
    k = qkv[..., head_dim:2 * head_dim]
    v = qkv[..., 2 * head_dim:]
    scores = jnp.einsum("bsnd,bsmd->bsnm", q, k, precision=hi)
    sub = scores - unified_max_value
    e = jnp.exp(sub)
    mask = (sub > unified_max_value) | (sub < -unified_max_value)
    e = jnp.where(mask, 0.0, e)
    denom = jnp.sum(e, axis=-1, keepdims=True)
    return jnp.einsum("bsnm,bsmd->bsnd", e / denom, v, precision=hi)


# ----------------------------- main --------------------------------------------

if __name__ == "__main__":
    key = jax.random.PRNGKey(0)

    # Shapes consistent with AsynchronizedAttention(dim=32, n_heads=4, umax=5.0)
    dim, n_heads, umax = 32, 4, 5.0
    kw, kb = jax.random.split(key, 2)
    w_qkv = 0.15 * jax.random.normal(kw, (3 * dim, dim), dtype=jnp.float32)
    b_qkv = 0.05 * jax.random.normal(kb, (3 * dim,), dtype=jnp.float32)

    def run_case(case_key, B, S):
        x = jax.random.normal(case_key, (B, S, dim), dtype=jnp.float32)
        out = jax.block_until_ready(
            asynchronized_attention_forward(x, w_qkv, b_qkv, n_heads, umax))
        assert out.shape == (B, S, n_heads, dim // n_heads)
        ref = reference_forward(x, w_qkv, b_qkv, n_heads, umax)
        # Fully-masked rows give 0/0 = NaN in both kernel and reference
        # (matches the PyTorch module); assert_allclose treats NaN == NaN.
        np.testing.assert_allclose(np.asarray(out), np.asarray(ref),
                                   rtol=1e-4, atol=1e-4)

    run_case(jax.random.fold_in(key, 0), B=2, S=8)    # single full-extent block
    run_case(jax.random.fold_in(key, 1), B=3, S=5)    # rows not a multiple of 8
    run_case(jax.random.fold_in(key, 2), B=3, S=50)   # grid > 1 + masked tail block

    print("KERNEL_OK")
</pallas_src>

<mosaic_0001>
module attributes {stable_mosaic.version = 11 : i64} {
  func.func @_fused_async_attn_kernel(%arg0: i32, %arg1: memref<16x32xf32, #tpu.memory_space<vmem>>, %arg2: memref<96x32xf32, #tpu.memory_space<vmem>>, %arg3: memref<96x1xf32, #tpu.memory_space<vmem>>, %arg4: memref<32x16xf32, #tpu.memory_space<vmem>>) attributes {dimension_semantics = [#tpu.dimension_semantics<parallel>], iteration_bounds = array<i64: 1>, scalar_prefetch = 0 : i64, scratch_operands = 0 : i64, tpu.core_type = #tpu.core_type<tc>, window_params = [{transform_indices = @transform_0, window_bounds = array<i64: 16, 32>}, {pipeline_mode = #tpu.pipeline_mode<synchronous>, transform_indices = @transform_1, window_bounds = array<i64: 96, 32>}, {pipeline_mode = #tpu.pipeline_mode<synchronous>, transform_indices = @transform_2, window_bounds = array<i64: 96, 1>}, {transform_indices = @transform_3, window_bounds = array<i64: 32, 16>}]} {
    %c0 = arith.constant 0 : index
    %c0_0 = arith.constant 0 : index
    %0 = vector.load %arg2[%c0, %c0_0] : memref<96x32xf32, #tpu.memory_space<vmem>>, vector<96x32xf32>
    %c0_1 = arith.constant 0 : index
    %c0_2 = arith.constant 0 : index
    %1 = vector.load %arg1[%c0_1, %c0_2] : memref<16x32xf32, #tpu.memory_space<vmem>>, vector<16x32xf32>
    %cst = arith.constant dense<0.000000e+00> : vector<96x16xf32>
    %2 = tpu.matmul %0, %1, %cst {dimension_numbers = #tpu.dot_dimension_numbers<[1], [1], [0], [0], [0, 0, 1, 0], [], []>} : vector<96x32xf32>, vector<16x32xf32>, vector<96x16xf32> -> vector<96x16xf32>
    %c0_3 = arith.constant 0 : index
    %c0_4 = arith.constant 0 : index
    %3 = vector.load %arg3[%c0_3, %c0_4] : memref<96x1xf32, #tpu.memory_space<vmem>>, vector<96x1xf32>
    %4 = vector.broadcast %3 : vector<96x1xf32> to vector<96x16xf32>
    %5 = arith.addf %2, %4 : vector<96x16xf32>
    %6 = vector.extract_strided_slice %5 {offsets = [0, 0], sizes = [32, 16], strides = [1, 1]} : vector<96x16xf32> to vector<32x16xf32>
    %7 = vector.extract_strided_slice %5 {offsets = [32, 0], sizes = [32, 16], strides = [1, 1]} : vector<96x16xf32> to vector<32x16xf32>
    %8 = vector.extract_strided_slice %5 {offsets = [64, 0], sizes = [32, 16], strides = [1, 1]} : vector<96x16xf32> to vector<32x16xf32>
    %9 = vector.extract_strided_slice %6 {offsets = [0, 0], sizes = [8, 16], strides = [1, 1]} : vector<32x16xf32> to vector<8x16xf32>
    %10 = vector.extract_strided_slice %7 {offsets = [0, 0], sizes = [8, 16], strides = [1, 1]} : vector<32x16xf32> to vector<8x16xf32>
    %11 = arith.mulf %9, %10 : vector<8x16xf32>
    %cst_5 = arith.constant dense<0.000000e+00> : vector<16xf32>
    %12 = vector.multi_reduction <add>, %11, %cst_5 [0] : vector<8x16xf32> to vector<16xf32>
    %13 = vector.shape_cast %12 : vector<16xf32> to vector<1x16xf32>
    %cst_6 = arith.constant 5.000000e+00 : f32
    %14 = vector.broadcast %cst_6 : f32 to vector<1x16xf32>
    %15 = arith.subf %13, %14 : vector<1x16xf32>
    %16 = math.exp %15 : vector<1x16xf32>
    %17 = math.absf %15 : vector<1x16xf32>
    %cst_7 = arith.constant 5.000000e+00 : f32
    %18 = vector.broadcast %cst_7 : f32 to vector<1x16xf32>
    %19 = arith.cmpf ogt, %17, %18 : vector<1x16xf32>
    %cst_8 = arith.constant 0.000000e+00 : f32
    %20 = vector.broadcast %cst_8 : f32 to vector<1x16xf32>
    %21 = arith.select %19, %20, %16 : vector<1x16xi1>, vector<1x16xf32>
    %22 = vector.extract_strided_slice %7 {offsets = [8, 0], sizes = [8, 16], strides = [1, 1]} : vector<32x16xf32> to vector<8x16xf32>
    %23 = arith.mulf %9, %22 : vector<8x16xf32>
    %cst_9 = arith.constant dense<0.000000e+00> : vector<16xf32>
    %24 = vector.multi_reduction <add>, %23, %cst_9 [0] : vector<8x16xf32> to vector<16xf32>
    %25 = vector.shape_cast %24 : vector<16xf32> to vector<1x16xf32>
    %cst_10 = arith.constant 5.000000e+00 : f32
    %26 = vector.broadcast %cst_10 : f32 to vector<1x16xf32>
    %27 = arith.subf %25, %26 : vector<1x16xf32>
    %28 = math.exp %27 : vector<1x16xf32>
    %29 = math.absf %27 : vector<1x16xf32>
    %cst_11 = arith.constant 5.000000e+00 : f32
    %30 = vector.broadcast %cst_11 : f32 to vector<1x16xf32>
    %31 = arith.cmpf ogt, %29, %30 : vector<1x16xf32>
    %cst_12 = arith.constant 0.000000e+00 : f32
    %32 = vector.broadcast %cst_12 : f32 to vector<1x16xf32>
    %33 = arith.select %31, %32, %28 : vector<1x16xi1>, vector<1x16xf32>
    %34 = vector.extract_strided_slice %7 {offsets = [16, 0], sizes = [8, 16], strides = [1, 1]} : vector<32x16xf32> to vector<8x16xf32>
    %35 = arith.mulf %9, %34 : vector<8x16xf32>
    %cst_13 = arith.constant dense<0.000000e+00> : vector<16xf32>
    %36 = vector.multi_reduction <add>, %35, %cst_13 [0] : vector<8x16xf32> to vector<16xf32>
    %37 = vector.shape_cast %36 : vector<16xf32> to vector<1x16xf32>
    %cst_14 = arith.constant 5.000000e+00 : f32
    %38 = vector.broadcast %cst_14 : f32 to vector<1x16xf32>
    %39 = arith.subf %37, %38 : vector<1x16xf32>
    %40 = math.exp %39 : vector<1x16xf32>
    %41 = math.absf %39 : vector<1x16xf32>
    %cst_15 = arith.constant 5.000000e+00 : f32
    %42 = vector.broadcast %cst_15 : f32 to vector<1x16xf32>
    %43 = arith.cmpf ogt, %41, %42 : vector<1x16xf32>
    %cst_16 = arith.constant 0.000000e+00 : f32
    %44 = vector.broadcast %cst_16 : f32 to vector<1x16xf32>
    %45 = arith.select %43, %44, %40 : vector<1x16xi1>, vector<1x16xf32>
    %46 = vector.extract_strided_slice %7 {offsets = [24, 0], sizes = [8, 16], strides = [1, 1]} : vector<32x16xf32> to vector<8x16xf32>
    %47 = arith.mulf %9, %46 : vector<8x16xf32>
    %cst_17 = arith.constant dense<0.000000e+00> : vector<16xf32>
    %48 = vector.multi_reduction <add>, %47, %cst_17 [0] : vector<8x16xf32> to vector<16xf32>
    %49 = vector.shape_cast %48 : vector<16xf32> to vector<1x16xf32>
    %cst_18 = arith.constant 5.000000e+00 : f32
    %50 = vector.broadcast %cst_18 : f32 to vector<1x16xf32>
    %51 = arith.subf %49, %50 : vector<1x16xf32>
    %52 = math.exp %51 : vector<1x16xf32>
    %53 = math.absf %51 : vector<1x16xf32>
    %cst_19 = arith.constant 5.000000e+00 : f32
    %54 = vector.broadcast %cst_19 : f32 to vector<1x16xf32>
    %55 = arith.cmpf ogt, %53, %54 : vector<1x16xf32>
    %cst_20 = arith.constant 0.000000e+00 : f32
    %56 = vector.broadcast %cst_20 : f32 to vector<1x16xf32>
    %57 = arith.select %55, %56, %52 : vector<1x16xi1>, vector<1x16xf32>
    %58 = arith.addf %21, %33 : vector<1x16xf32>
    %59 = arith.addf %58, %45 : vector<1x16xf32>
    %60 = arith.addf %59, %57 : vector<1x16xf32>
    %cst_21 = arith.constant 1.000000e+00 : f32
    %61 = vector.broadcast %cst_21 : f32 to vector<1x16xf32>
    %62 = arith.divf %61, %60 : vector<1x16xf32>
    %63 = arith.mulf %21, %62 : vector<1x16xf32>
    %64 = vector.extract_strided_slice %8 {offsets = [0, 0], sizes = [8, 16], strides = [1, 1]} : vector<32x16xf32> to vector<8x16xf32>
    %65 = vector.broadcast %63 : vector<1x16xf32> to vector<8x16xf32>
    %66 = arith.mulf %65, %64 : vector<8x16xf32>
    %67 = arith.mulf %33, %62 : vector<1x16xf32>
    %68 = vector.extract_strided_slice %8 {offsets = [8, 0], sizes = [8, 16], strides = [1, 1]} : vector<32x16xf32> to vector<8x16xf32>
    %69 = vector.broadcast %67 : vector<1x16xf32> to vector<8x16xf32>
    %70 = arith.mulf %69, %68 : vector<8x16xf32>
    %71 = arith.addf %66, %70 : vector<8x16xf32>
    %72 = arith.mulf %45, %62 : vector<1x16xf32>
    %73 = vector.extract_strided_slice %8 {offsets = [16, 0], sizes = [8, 16], strides = [1, 1]} : vector<32x16xf32> to vector<8x16xf32>
    %74 = vector.broadcast %72 : vector<1x16xf32> to vector<8x16xf32>
    %75 = arith.mulf %74, %73 : vector<8x16xf32>
    %76 = arith.addf %71, %75 : vector<8x16xf32>
    %77 = arith.mulf %57, %62 : vector<1x16xf32>
    %78 = vector.extract_strided_slice %8 {offsets = [24, 0], sizes = [8, 16], strides = [1, 1]} : vector<32x16xf32> to vector<8x16xf32>
    %79 = vector.broadcast %77 : vector<1x16xf32> to vector<8x16xf32>
    %80 = arith.mulf %79, %78 : vector<8x16xf32>
    %81 = arith.addf %76, %80 : vector<8x16xf32>
    %c0_22 = arith.constant 0 : index
    %c0_23 = arith.constant 0 : index
    %82 = vector.load %arg4[%c0_22, %c0_23] : memref<32x16xf32, #tpu.memory_space<vmem>>, vector<8x16xf32>
    tpu.vector_store %arg4[%c0_22, %c0_23], %81 {strides = array<i32>} : memref<32x16xf32, #tpu.memory_space<vmem>>, vector<8x16xf32>,
    %83 = vector.extract_strided_slice %6 {offsets = [8, 0], sizes = [8, 16], strides = [1, 1]} : vector<32x16xf32> to vector<8x16xf32>
    %84 = vector.extract_strided_slice %7 {offsets = [0, 0], sizes = [8, 16], strides = [1, 1]} : vector<32x16xf32> to vector<8x16xf32>
    %85 = arith.mulf %83, %84 : vector<8x16xf32>
    %cst_24 = arith.constant dense<0.000000e+00> : vector<16xf32>
    %86 = vector.multi_reduction <add>, %85, %cst_24 [0] : vector<8x16xf32> to vector<16xf32>
    %87 = vector.shape_cast %86 : vector<16xf32> to vector<1x16xf32>
    %cst_25 = arith.constant 5.000000e+00 : f32
    %88 = vector.broadcast %cst_25 : f32 to vector<1x16xf32>
    %89 = arith.subf %87, %88 : vector<1x16xf32>
    %90 = math.exp %89 : vector<1x16xf32>
    %91 = math.absf %89 : vector<1x16xf32>
    %cst_26 = arith.constant 5.000000e+00 : f32
    %92 = vector.broadcast %cst_26 : f32 to vector<1x16xf32>
    %93 = arith.cmpf ogt, %91, %92 : vector<1x16xf32>
    %cst_27 = arith.constant 0.000000e+00 : f32
    %94 = vector.broadcast %cst_27 : f32 to vector<1x16xf32>
    %95 = arith.select %93, %94, %90 : vector<1x16xi1>, vector<1x16xf32>
    %96 = vector.extract_strided_slice %7 {offsets = [8, 0], sizes = [8, 16], strides = [1, 1]} : vector<32x16xf32> to vector<8x16xf32>
    %97 = arith.mulf %83, %96 : vector<8x16xf32>
    %cst_28 = arith.constant dense<0.000000e+00> : vector<16xf32>
    %98 = vector.multi_reduction <add>, %97, %cst_28 [0] : vector<8x16xf32> to vector<16xf32>
    %99 = vector.shape_cast %98 : vector<16xf32> to vector<1x16xf32>
    %cst_29 = arith.constant 5.000000e+00 : f32
    %100 = vector.broadcast %cst_29 : f32 to vector<1x16xf32>
    %101 = arith.subf %99, %100 : vector<1x16xf32>
    %102 = math.exp %101 : vector<1x16xf32>
    %103 = math.absf %101 : vector<1x16xf32>
    %cst_30 = arith.constant 5.000000e+00 : f32
    %104 = vector.broadcast %cst_30 : f32 to vector<1x16xf32>
    %105 = arith.cmpf ogt, %103, %104 : vector<1x16xf32>
    %cst_31 = arith.constant 0.000000e+00 : f32
    %106 = vector.broadcast %cst_31 : f32 to vector<1x16xf32>
    %107 = arith.select %105, %106, %102 : vector<1x16xi1>, vector<1x16xf32>
    %108 = vector.extract_strided_slice %7 {offsets = [16, 0], sizes = [8, 16], strides = [1, 1]} : vector<32x16xf32> to vector<8x16xf32>
    %109 = arith.mulf %83, %108 : vector<8x16xf32>
    %cst_32 = arith.constant dense<0.000000e+00> : vector<16xf32>
    %110 = vector.multi_reduction <add>, %109, %cst_32 [0] : vector<8x16xf32> to vector<16xf32>
    %111 = vector.shape_cast %110 : vector<16xf32> to vector<1x16xf32>
    %cst_33 = arith.constant 5.000000e+00 : f32
    %112 = vector.broadcast %cst_33 : f32 to vector<1x16xf32>
    %113 = arith.subf %111, %112 : vector<1x16xf32>
    %114 = math.exp %113 : vector<1x16xf32>
    %115 = math.absf %113 : vector<1x16xf32>
    %cst_34 = arith.constant 5.000000e+00 : f32
    %116 = vector.broadcast %cst_34 : f32 to vector<1x16xf32>
    %117 = arith.cmpf ogt, %115, %116 : vector<1x16xf32>
    %cst_35 = arith.constant 0.000000e+00 : f32
    %118 = vector.broadcast %cst_35 : f32 to vector<1x16xf32>
    %119 = arith.select %117, %118, %114 : vector<1x16xi1>, vector<1x16xf32>
    %120 = vector.extract_strided_slice %7 {offsets = [24, 0], sizes = [8, 16], strides = [1, 1]} : vector<32x16xf32> to vector<8x16xf32>
    %121 = arith.mulf %83, %120 : vector<8x16xf32>
    %cst_36 = arith.constant dense<0.000000e+00> : vector<16xf32>
    %122 = vector.multi_reduction <add>, %121, %cst_36 [0] : vector<8x16xf32> to vector<16xf32>
    %123 = vector.shape_cast %122 : vector<16xf32> to vector<1x16xf32>
    %cst_37 = arith.constant 5.000000e+00 : f32
    %124 = vector.broadcast %cst_37 : f32 to vector<1x16xf32>
    %125 = arith.subf %123, %124 : vector<1x16xf32>
    %126 = math.exp %125 : vector<1x16xf32>
    %127 = math.absf %125 : vector<1x16xf32>
    %cst_38 = arith.constant 5.000000e+00 : f32
    %128 = vector.broadcast %cst_38 : f32 to vector<1x16xf32>
    %129 = arith.cmpf ogt, %127, %128 : vector<1x16xf32>
    %cst_39 = arith.constant 0.000000e+00 : f32
    %130 = vector.broadcast %cst_39 : f32 to vector<1x16xf32>
    %131 = arith.select %129, %130, %126 : vector<1x16xi1>, vector<1x16xf32>
    %132 = arith.addf %95, %107 : vector<1x16xf32>
    %133 = arith.addf %132, %119 : vector<1x16xf32>
    %134 = arith.addf %133, %131 : vector<1x16xf32>
    %cst_40 = arith.constant 1.000000e+00 : f32
    %135 = vector.broadcast %cst_40 : f32 to vector<1x16xf32>
    %136 = arith.divf %135, %134 : vector<1x16xf32>
    %137 = arith.mulf %95, %136 : vector<1x16xf32>
    %138 = vector.extract_strided_slice %8 {offsets = [0, 0], sizes = [8, 16], strides = [1, 1]} : vector<32x16xf32> to vector<8x16xf32>
    %139 = vector.broadcast %137 : vector<1x16xf32> to vector<8x16xf32>
    %140 = arith.mulf %139, %138 : vector<8x16xf32>
    %141 = arith.mulf %107, %136 : vector<1x16xf32>
    %142 = vector.extract_strided_slice %8 {offsets = [8, 0], sizes = [8, 16], strides = [1, 1]} : vector<32x16xf32> to vector<8x16xf32>
    %143 = vector.broadcast %141 : vector<1x16xf32> to vector<8x16xf32>
    %144 = arith.mulf %143, %142 : vector<8x16xf32>
    %145 = arith.addf %140, %144 : vector<8x16xf32>
    %146 = arith.mulf %119, %136 : vector<1x16xf32>
    %147 = vector.extract_strided_slice %8 {offsets = [16, 0], sizes = [8, 16], strides = [1, 1]} : vector<32x16xf32> to vector<8x16xf32>
    %148 = vector.broadcast %146 : vector<1x16xf32> to vector<8x16xf32>
    %149 = arith.mulf %148, %147 : vector<8x16xf32>
    %150 = arith.addf %145, %149 : vector<8x16xf32>
    %151 = arith.mulf %131, %136 : vector<1x16xf32>
    %152 = vector.extract_strided_slice %8 {offsets = [24, 0], sizes = [8, 16], strides = [1, 1]} : vector<32x16xf32> to vector<8x16xf32>
    %153 = vector.broadcast %151 : vector<1x16xf32> to vector<8x16xf32>
    %154 = arith.mulf %153, %152 : vector<8x16xf32>
    %155 = arith.addf %150, %154 : vector<8x16xf32>
    %c8 = arith.constant 8 : index
    %c0_41 = arith.constant 0 : index
    %156 = vector.load %arg4[%c8, %c0_41] : memref<32x16xf32, #tpu.memory_space<vmem>>, vector<8x16xf32>
    tpu.vector_store %arg4[%c8, %c0_41], %155 {strides = array<i32>} : memref<32x16xf32, #tpu.memory_space<vmem>>, vector<8x16xf32>,
    %157 = vector.extract_strided_slice %6 {offsets = [16, 0], sizes = [8, 16], strides = [1, 1]} : vector<32x16xf32> to vector<8x16xf32>
    %158 = vector.extract_strided_slice %7 {offsets = [0, 0], sizes = [8, 16], strides = [1, 1]} : vector<32x16xf32> to vector<8x16xf32>
    %159 = arith.mulf %157, %158 : vector<8x16xf32>
    %cst_42 = arith.constant dense<0.000000e+00> : vector<16xf32>
    %160 = vector.multi_reduction <add>, %159, %cst_42 [0] : vector<8x16xf32> to vector<16xf32>
    %161 = vector.shape_cast %160 : vector<16xf32> to vector<1x16xf32>
    %cst_43 = arith.constant 5.000000e+00 : f32
    %162 = vector.broadcast %cst_43 : f32 to vector<1x16xf32>
    %163 = arith.subf %161, %162 : vector<1x16xf32>
    %164 = math.exp %163 : vector<1x16xf32>
    %165 = math.absf %163 : vector<1x16xf32>
    %cst_44 = arith.constant 5.000000e+00 : f32
    %166 = vector.broadcast %cst_44 : f32 to vector<1x16xf32>
    %167 = arith.cmpf ogt, %165, %166 : vector<1x16xf32>
    %cst_45 = arith.constant 0.000000e+00 : f32
    %168 = vector.broadcast %cst_45 : f32 to vector<1x16xf32>
    %169 = arith.select %167, %168, %164 : vector<1x16xi1>, vector<1x16xf32>
    %170 = vector.extract_strided_slice %7 {offsets = [8, 0], sizes = [8, 16], strides = [1, 1]} : vector<32x16xf32> to vector<8x16xf32>
    %171 = arith.mulf %157, %170 : vector<8x16xf32>
    %cst_46 = arith.constant dense<0.000000e+00> : vector<16xf32>
    %172 = vector.multi_reduction <add>, %171, %cst_46 [0] : vector<8x16xf32> to vector<16xf32>
    %173 = vector.shape_cast %172 : vector<16xf32> to vector<1x16xf32>
    %cst_47 = arith.constant 5.000000e+00 : f32
    %174 = vector.broadcast %cst_47 : f32 to vector<1x16xf32>
    %175 = arith.subf %173, %174 : vector<1x16xf32>
    %176 = math.exp %175 : vector<1x16xf32>
    %177 = math.absf %175 : vector<1x16xf32>
    %cst_48 = arith.constant 5.000000e+00 : f32
    %178 = vector.broadcast %cst_48 : f32 to vector<1x16xf32>
    %179 = arith.cmpf ogt, %177, %178 : vector<1x16xf32>
    %cst_49 = arith.constant 0.000000e+00 : f32
    %180 = vector.broadcast %cst_49 : f32 to vector<1x16xf32>
    %181 = arith.select %179, %180, %176 : vector<1x16xi1>, vector<1x16xf32>
    %182 = vector.extract_strided_slice %7 {offsets = [16, 0], sizes = [8, 16], strides = [1, 1]} : vector<32x16xf32> to vector<8x16xf32>
    %183 = arith.mulf %157, %182 : vector<8x16xf32>
    %cst_50 = arith.constant dense<0.000000e+00> : vector<16xf32>
    %184 = vector.multi_reduction <add>, %183, %cst_50 [0] : vector<8x16xf32> to vector<16xf32>
    %185 = vector.shape_cast %184 : vector<16xf32> to vector<1x16xf32>
    %cst_51 = arith.constant 5.000000e+00 : f32
    %186 = vector.broadcast %cst_51 : f32 to vector<1x16xf32>
    %187 = arith.subf %185, %186 : vector<1x16xf32>
    %188 = math.exp %187 : vector<1x16xf32>
    %189 = math.absf %187 : vector<1x16xf32>
    %cst_52 = arith.constant 5.000000e+00 : f32
    %190 = vector.broadcast %cst_52 : f32 to vector<1x16xf32>
    %191 = arith.cmpf ogt, %189, %190 : vector<1x16xf32>
    %cst_53 = arith.constant 0.000000e+00 : f32
    %192 = vector.broadcast %cst_53 : f32 to vector<1x16xf32>
    %193 = arith.select %191, %192, %188 : vector<1x16xi1>, vector<1x16xf32>
    %194 = vector.extract_strided_slice %7 {offsets = [24, 0], sizes = [8, 16], strides = [1, 1]} : vector<32x16xf32> to vector<8x16xf32>
    %195 = arith.mulf %157, %194 : vector<8x16xf32>
    %cst_54 = arith.constant dense<0.000000e+00> : vector<16xf32>
    %196 = vector.multi_reduction <add>, %195, %cst_54 [0] : vector<8x16xf32> to vector<16xf32>
    %197 = vector.shape_cast %196 : vector<16xf32> to vector<1x16xf32>
    %cst_55 = arith.constant 5.000000e+00 : f32
    %198 = vector.broadcast %cst_55 : f32 to vector<1x16xf32>
    %199 = arith.subf %197, %198 : vector<1x16xf32>
    %200 = math.exp %199 : vector<1x16xf32>
    %201 = math.absf %199 : vector<1x16xf32>
    %cst_56 = arith.constant 5.000000e+00 : f32
    %202 = vector.broadcast %cst_56 : f32 to vector<1x16xf32>
    %203 = arith.cmpf ogt, %201, %202 : vector<1x16xf32>
    %cst_57 = arith.constant 0.000000e+00 : f32
    %204 = vector.broadcast %cst_57 : f32 to vector<1x16xf32>
    %205 = arith.select %203, %204, %200 : vector<1x16xi1>, vector<1x16xf32>
    %206 = arith.addf %169, %181 : vector<1x16xf32>
    %207 = arith.addf %206, %193 : vector<1x16xf32>
    %208 = arith.addf %207, %205 : vector<1x16xf32>
    %cst_58 = arith.constant 1.000000e+00 : f32
    %209 = vector.broadcast %cst_58 : f32 to vector<1x16xf32>
    %210 = arith.divf %209, %208 : vector<1x16xf32>
    %211 = arith.mulf %169, %210 : vector<1x16xf32>
    %212 = vector.extract_strided_slice %8 {offsets = [0, 0], sizes = [8, 16], strides = [1, 1]} : vector<32x16xf32> to vector<8x16xf32>
    %213 = vector.broadcast %211 : vector<1x16xf32> to vector<8x16xf32>
    %214 = arith.mulf %213, %212 : vector<8x16xf32>
    %215 = arith.mulf %181, %210 : vector<1x16xf32>
    %216 = vector.extract_strided_slice %8 {offsets = [8, 0], sizes = [8, 16], strides = [1, 1]} : vector<32x16xf32> to vector<8x16xf32>
    %217 = vector.broadcast %215 : vector<1x16xf32> to vector<8x16xf32>
    %218 = arith.mulf %217, %216 : vector<8x16xf32>
    %219 = arith.addf %214, %218 : vector<8x16xf32>
    %220 = arith.mulf %193, %210 : vector<1x16xf32>
    %221 = vector.extract_strided_slice %8 {offsets = [16, 0], sizes = [8, 16], strides = [1, 1]} : vector<32x16xf32> to vector<8x16xf32>
    %222 = vector.broadcast %220 : vector<1x16xf32> to vector<8x16xf32>
    %223 = arith.mulf %222, %221 : vector<8x16xf32>
    %224 = arith.addf %219, %223 : vector<8x16xf32>
    %225 = arith.mulf %205, %210 : vector<1x16xf32>
    %226 = vector.extract_strided_slice %8 {offsets = [24, 0], sizes = [8, 16], strides = [1, 1]} : vector<32x16xf32> to vector<8x16xf32>
    %227 = vector.broadcast %225 : vector<1x16xf32> to vector<8x16xf32>
    %228 = arith.mulf %227, %226 : vector<8x16xf32>
    %229 = arith.addf %224, %228 : vector<8x16xf32>
    %c16 = arith.constant 16 : index
    %c0_59 = arith.constant 0 : index
    %230 = vector.load %arg4[%c16, %c0_59] : memref<32x16xf32, #tpu.memory_space<vmem>>, vector<8x16xf32>
    tpu.vector_store %arg4[%c16, %c0_59], %229 {strides = array<i32>} : memref<32x16xf32, #tpu.memory_space<vmem>>, vector<8x16xf32>,
    %231 = vector.extract_strided_slice %6 {offsets = [24, 0], sizes = [8, 16], strides = [1, 1]} : vector<32x16xf32> to vector<8x16xf32>
    %232 = vector.extract_strided_slice %7 {offsets = [0, 0], sizes = [8, 16], strides = [1, 1]} : vector<32x16xf32> to vector<8x16xf32>
    %233 = arith.mulf %231, %232 : vector<8x16xf32>
    %cst_60 = arith.constant dense<0.000000e+00> : vector<16xf32>
    %234 = vector.multi_reduction <add>, %233, %cst_60 [0] : vector<8x16xf32> to vector<16xf32>
    %235 = vector.shape_cast %234 : vector<16xf32> to vector<1x16xf32>
    %cst_61 = arith.constant 5.000000e+00 : f32
    %236 = vector.broadcast %cst_61 : f32 to vector<1x16xf32>
    %237 = arith.subf %235, %236 : vector<1x16xf32>
    %238 = math.exp %237 : vector<1x16xf32>
    %239 = math.absf %237 : vector<1x16xf32>
    %cst_62 = arith.constant 5.000000e+00 : f32
    %240 = vector.broadcast %cst_62 : f32 to vector<1x16xf32>
    %241 = arith.cmpf ogt, %239, %240 : vector<1x16xf32>
    %cst_63 = arith.constant 0.000000e+00 : f32
    %242 = vector.broadcast %cst_63 : f32 to vector<1x16xf32>
    %243 = arith.select %241, %242, %238 : vector<1x16xi1>, vector<1x16xf32>
    %244 = vector.extract_strided_slice %7 {offsets = [8, 0], sizes = [8, 16], strides = [1, 1]} : vector<32x16xf32> to vector<8x16xf32>
    %245 = arith.mulf %231, %244 : vector<8x16xf32>
    %cst_64 = arith.constant dense<0.000000e+00> : vector<16xf32>
    %246 = vector.multi_reduction <add>, %245, %cst_64 [0] : vector<8x16xf32> to vector<16xf32>
    %247 = vector.shape_cast %246 : vector<16xf32> to vector<1x16xf32>
    %cst_65 = arith.constant 5.000000e+00 : f32
    %248 = vector.broadcast %cst_65 : f32 to vector<1x16xf32>
    %249 = arith.subf %247, %248 : vector<1x16xf32>
    %250 = math.exp %249 : vector<1x16xf32>
    %251 = math.absf %249 : vector<1x16xf32>
    %cst_66 = arith.constant 5.000000e+00 : f32
    %252 = vector.broadcast %cst_66 : f32 to vector<1x16xf32>
    %253 = arith.cmpf ogt, %251, %252 : vector<1x16xf32>
    %cst_67 = arith.constant 0.000000e+00 : f32
    %254 = vector.broadcast %cst_67 : f32 to vector<1x16xf32>
    %255 = arith.select %253, %254, %250 : vector<1x16xi1>, vector<1x16xf32>
    %256 = vector.extract_strided_slice %7 {offsets = [16, 0], sizes = [8, 16], strides = [1, 1]} : vector<32x16xf32> to vector<8x16xf32>
    %257 = arith.mulf %231, %256 : vector<8x16xf32>
    %cst_68 = arith.constant dense<0.000000e+00> : vector<16xf32>
    %258 = vector.multi_reduction <add>, %257, %cst_68 [0] : vector<8x16xf32> to vector<16xf32>
    %259 = vector.shape_cast %258 : vector<16xf32> to vector<1x16xf32>
    %cst_69 = arith.constant 5.000000e+00 : f32
    %260 = vector.broadcast %cst_69 : f32 to vector<1x16xf32>
    %261 = arith.subf %259, %260 : vector<1x16xf32>
    %262 = math.exp %261 : vector<1x16xf32>
    %263 = math.absf %261 : vector<1x16xf32>
    %cst_70 = arith.constant 5.000000e+00 : f32
    %264 = vector.broadcast %cst_70 : f32 to vector<1x16xf32>
    %265 = arith.cmpf ogt, %263, %264 : vector<1x16xf32>
    %cst_71 = arith.constant 0.000000e+00 : f32
    %266 = vector.broadcast %cst_71 : f32 to vector<1x16xf32>
    %267 = arith.select %265, %266, %262 : vector<1x16xi1>, vector<1x16xf32>
    %268 = vector.extract_strided_slice %7 {offsets = [24, 0], sizes = [8, 16], strides = [1, 1]} : vector<32x16xf32> to vector<8x16xf32>
    %269 = arith.mulf %231, %268 : vector<8x16xf32>
    %cst_72 = arith.constant dense<0.000000e+00> : vector<16xf32>
    %270 = vector.multi_reduction <add>, %269, %cst_72 [0] : vector<8x16xf32> to vector<16xf32>
    %271 = vector.shape_cast %270 : vector<16xf32> to vector<1x16xf32>
    %cst_73 = arith.constant 5.000000e+00 : f32
    %272 = vector.broadcast %cst_73 : f32 to vector<1x16xf32>
    %273 = arith.subf %271, %272 : vector<1x16xf32>
    %274 = math.exp %273 : vector<1x16xf32>
    %275 = math.absf %273 : vector<1x16xf32>
    %cst_74 = arith.constant 5.000000e+00 : f32
    %276 = vector.broadcast %cst_74 : f32 to vector<1x16xf32>
    %277 = arith.cmpf ogt, %275, %276 : vector<1x16xf32>
    %cst_75 = arith.constant 0.000000e+00 : f32
    %278 = vector.broadcast %cst_75 : f32 to vector<1x16xf32>
    %279 = arith.select %277, %278, %274 : vector<1x16xi1>, vector<1x16xf32>
    %280 = arith.addf %243, %255 : vector<1x16xf32>
    %281 = arith.addf %280, %267 : vector<1x16xf32>
    %282 = arith.addf %281, %279 : vector<1x16xf32>
    %cst_76 = arith.constant 1.000000e+00 : f32
    %283 = vector.broadcast %cst_76 : f32 to vector<1x16xf32>
    %284 = arith.divf %283, %282 : vector<1x16xf32>
    %285 = arith.mulf %243, %284 : vector<1x16xf32>
    %286 = vector.extract_strided_slice %8 {offsets = [0, 0], sizes = [8, 16], strides = [1, 1]} : vector<32x16xf32> to vector<8x16xf32>
    %287 = vector.broadcast %285 : vector<1x16xf32> to vector<8x16xf32>
    %288 = arith.mulf %287, %286 : vector<8x16xf32>
    %289 = arith.mulf %255, %284 : vector<1x16xf32>
    %290 = vector.extract_strided_slice %8 {offsets = [8, 0], sizes = [8, 16], strides = [1, 1]} : vector<32x16xf32> to vector<8x16xf32>
    %291 = vector.broadcast %289 : vector<1x16xf32> to vector<8x16xf32>
    %292 = arith.mulf %291, %290 : vector<8x16xf32>
    %293 = arith.addf %288, %292 : vector<8x16xf32>
    %294 = arith.mulf %267, %284 : vector<1x16xf32>
    %295 = vector.extract_strided_slice %8 {offsets = [16, 0], sizes = [8, 16], strides = [1, 1]} : vector<32x16xf32> to vector<8x16xf32>
    %296 = vector.broadcast %294 : vector<1x16xf32> to vector<8x16xf32>
    %297 = arith.mulf %296, %295 : vector<8x16xf32>
    %298 = arith.addf %293, %297 : vector<8x16xf32>
    %299 = arith.mulf %279, %284 : vector<1x16xf32>
    %300 = vector.extract_strided_slice %8 {offsets = [24, 0], sizes = [8, 16], strides = [1, 1]} : vector<32x16xf32> to vector<8x16xf32>
    %301 = vector.broadcast %299 : vector<1x16xf32> to vector<8x16xf32>
    %302 = arith.mulf %301, %300 : vector<8x16xf32>
    %303 = arith.addf %298, %302 : vector<8x16xf32>
    %c24 = arith.constant 24 : index
    %c0_77 = arith.constant 0 : index
    %304 = vector.load %arg4[%c24, %c0_77] : memref<32x16xf32, #tpu.memory_space<vmem>>, vector<8x16xf32>
    tpu.vector_store %arg4[%c24, %c0_77], %303 {strides = array<i32>} : memref<32x16xf32, #tpu.memory_space<vmem>>, vector<8x16xf32>,
    return
  }
  func.func @transform_0(%arg0: i32) -> (i32, i32) {
    %c0_i32 = arith.constant 0 : i32
    %c0_i32_0 = arith.constant 0 : i32
    return %arg0, %c0_i32 : i32, i32
  }
  func.func @transform_1(%arg0: i32) -> (i32, i32) {
    %c0_i32 = arith.constant 0 : i32
    %c0_i32_0 = arith.constant 0 : i32
    %c0_i32_1 = arith.constant 0 : i32
    return %c0_i32, %c0_i32_0 : i32, i32
  }
  func.func @transform_2(%arg0: i32) -> (i32, i32) {
    %c0_i32 = arith.constant 0 : i32
    %c0_i32_0 = arith.constant 0 : i32
    %c0_i32_1 = arith.constant 0 : i32
    return %c0_i32, %c0_i32_0 : i32, i32
  }
  func.func @transform_3(%arg0: i32) -> (i32, i32) {
    %c0_i32 = arith.constant 0 : i32
    %c0_i32_0 = arith.constant 0 : i32
    return %c0_i32, %arg0 : i32, i32
  }
}

</mosaic_0001>

<llo_original>
// kernel: tpu_custom_call.1
$region0: #{tpu_custom_call.1}
  #allocation0 [shape = 'u32[]', space=smem, size = 0x4, offset = 0x4, fixed_abs, tag = 'smem constant byte address 0x4 - core index']
  #allocation1 [shape = 'u32[144,128]{1,0:T(1,128)}', space=vmem, size = 0x12000, scoped, tag = 'internal scratch']
  %s0 = inlined_call_operand.vmem [shape: f32[16,32], index: 0, kind: input, shape index: {}]
  %s1 = inlined_call_operand.vmem [shape: f32[96,32], index: 1, kind: input, shape index: {}]
  %s2 = inlined_call_operand.vmem [shape: f32[96,1], index: 2, kind: input, shape index: {}]
  %s3 = inlined_call_operand.vmem [shape: f32[32,16], index: 3, kind: output, shape index: {}]
  %s4 = sld [smem:[#allocation0]]
  $region22: #{tpu_custom_call.1} parent=0
    _
  %s6 = ssub.s32 1, %s4
  %s7 = scalar_select 0, %s6, %s4
  // Predicated region
  $region2: #{tpu_custom_call.1} parent=0 // pred_check
    _
  $region3: #{tpu_custom_call.1} parent=0 // pred_check_branch
    %9 = sbr.rel (0) target = $region5
  $region4: #{tpu_custom_call.1} parent=0 // pred_region
    _
  $region5: #{tpu_custom_call.1} parent=0 // pred_fallthru
    _
  // Predicated region
  $region6: #{tpu_custom_call.1} parent=0 // pred_check
    _
  $region7: #{tpu_custom_call.1} parent=0 // pred_check_branch
    %11 = sbr.rel (0) target = $region9
  $region8: #{tpu_custom_call.1} parent=0 // pred_region
    _
  $region9: #{tpu_custom_call.1} parent=0 // pred_fallthru
    _
  // Predicated region
  $region10: #{tpu_custom_call.1} parent=0 // pred_check
    _
  $region11: #{tpu_custom_call.1} parent=0 // pred_check_branch
    %13 = sbr.rel (0) target = $region13
  $region12: #{tpu_custom_call.1} parent=0 // pred_region
    _
  $region13: #{tpu_custom_call.1} parent=0 // pred_fallthru
    _
  %v14 = vld [vmem:[%s1] sm:$0xff]
  %v15 = vld [vmem:[%s1 + $0x8] sm:$0xff]
  %v16 = vld [vmem:[%s1 + $0x10] sm:$0xff]
  %v17 = vld [vmem:[%s1 + $0x18] sm:$0xff]
  %v18 = vld [vmem:[%s1 + $0x20] sm:$0xff]
  %v19 = vld [vmem:[%s1 + $0x28] sm:$0xff]
  %v20 = vld [vmem:[%s1 + $0x30] sm:$0xff]
  %v21 = vld [vmem:[%s1 + $0x38] sm:$0xff]
  %v22 = vld [vmem:[%s1 + $0x40] sm:$0xff]
  %v23 = vld [vmem:[%s1 + $0x48] sm:$0xff]
  %v24 = vld [vmem:[%s1 + $0x50] sm:$0xff]
  %v25 = vld [vmem:[%s1 + $0x58] sm:$0xff]
  %v26 = vld [vmem:[%s0] sm:$0xff]
  %v27 = vld [vmem:[%s0 + $0x8] sm:$0xff]
  %v28 = vld [vmem:[%s2] sm:$0xff]
  %v29 = vld [vmem:[%s2 + $0x8] sm:$0xff]
  %v30 = vld [vmem:[%s2 + $0x10] sm:$0xff]
  %v31 = vld [vmem:[%s2 + $0x18] sm:$0xff]
  %v32 = vld [vmem:[%s2 + $0x20] sm:$0xff]
  %v33 = vld [vmem:[%s2 + $0x28] sm:$0xff]
  %v34 = vld [vmem:[%s2 + $0x30] sm:$0xff]
  %v35 = vld [vmem:[%s2 + $0x38] sm:$0xff]
  %v36 = vld [vmem:[%s2 + $0x40] sm:$0xff]
  %v37 = vld [vmem:[%s2 + $0x48] sm:$0xff]
  %v38 = vld [vmem:[%s2 + $0x50] sm:$0xff]
  %v39 = vld [vmem:[%s2 + $0x58] sm:$0xff]
  %41 = vset.pattern.permute.xlu0 0
  %42 = vperm.xlu0 %41, %v28
  %v43 = vpop.permute.xlu0 %42
  %46 = vset.pattern.permute.xlu0 0
  %47 = vperm.xlu0 %46, %v29
  %v48 = vpop.permute.xlu0 %47
  %51 = vset.pattern.permute.xlu0 0
  %52 = vperm.xlu0 %51, %v30
  %v53 = vpop.permute.xlu0 %52
  %56 = vset.pattern.permute.xlu0 0
  %57 = vperm.xlu0 %56, %v31
  %v58 = vpop.permute.xlu0 %57
  %61 = vset.pattern.permute.xlu0 0
  %62 = vperm.xlu0 %61, %v32
  %v63 = vpop.permute.xlu0 %62
  %66 = vset.pattern.permute.xlu0 0
  %67 = vperm.xlu0 %66, %v33
  %v68 = vpop.permute.xlu0 %67
  %71 = vset.pattern.permute.xlu0 0
  %72 = vperm.xlu0 %71, %v34
  %v73 = vpop.permute.xlu0 %72
  %76 = vset.pattern.permute.xlu0 0
  %77 = vperm.xlu0 %76, %v35
  %v78 = vpop.permute.xlu0 %77
  %81 = vset.pattern.permute.xlu0 0
  %82 = vperm.xlu0 %81, %v36
  %v83 = vpop.permute.xlu0 %82
  %86 = vset.pattern.permute.xlu0 0
  %87 = vperm.xlu0 %86, %v37
  %v88 = vpop.permute.xlu0 %87
  %91 = vset.pattern.permute.xlu0 0
  %92 = vperm.xlu0 %91, %v38
  %v93 = vpop.permute.xlu0 %92
  %96 = vset.pattern.permute.xlu0 0
  %97 = vperm.xlu0 %96, %v39
  %v98 = vpop.permute.xlu0 %97
  %vm100 = vcmask 261120
  %v102 = vsel %vm100, %v14, 0
  %v105 = vsel %vm100, %v15, 0
  %v108 = vsel %vm100, %v16, 0
  %v111 = vsel %vm100, %v17, 0
  %v114 = vsel %vm100, %v18, 0
  %v117 = vsel %vm100, %v19, 0
  %v120 = vsel %vm100, %v20, 0
  %v123 = vsel %vm100, %v21, 0
  %v126 = vsel %vm100, %v22, 0
  %v129 = vsel %vm100, %v23, 0
  %v132 = vsel %vm100, %v24, 0
  %v135 = vsel %vm100, %v25, 0
  %v138 = vsel %vm100, %v26, 0
  %v141 = vsel %vm100, %v27, 0
  %143 = vmatprep.subr.mxu0 0.0
  %144 = vmatpush1.xpose.msra.mxu0 0.0
  %145 = vmatprep.subr.mxu0 0.0
  %146 = vmatpush1.xpose.msra.mxu0 0.0
  %147 = vmatprep.subr.mxu0 0.0
  %148 = vmatpush1.xpose.msra.mxu0 0.0
  %149 = vmatprep.subr.mxu0 0.0
  %150 = vmatpush1.xpose.msra.mxu0 0.0
  %151 = vmatprep.subr.mxu0 0.0
  %152 = vmatpush1.xpose.msra.mxu0 0.0
  %153 = vmatprep.subr.mxu0 0.0
  %154 = vmatpush1.xpose.msra.mxu0 0.0
  %155 = vmatprep.subr.mxu0 0.0
  %156 = vmatpush1.xpose.msra.mxu0 0.0
  %157 = vmatprep.subr.mxu0 0.0
  %158 = vmatpush1.xpose.msra.mxu0 0.0
  %159 = vmatprep.subr.mxu0 0.0
  %160 = vmatpush1.xpose.msra.mxu0 0.0
  %161 = vmatprep.subr.mxu0 0.0
  %162 = vmatpush1.xpose.msra.mxu0 0.0
  %163 = vmatprep.subr.mxu0 0.0
  %164 = vmatpush1.xpose.msra.mxu0 0.0
  %165 = vmatprep.subr.mxu0 0.0
  %166 = vmatpush1.xpose.msra.mxu0 0.0
  %167 = vmatprep.subr.mxu0 0.0
  %168 = vmatpush1.xpose.msra.mxu0 0.0
  %169 = vmatprep.subr.mxu0 0.0
  %170 = vmatpush1.xpose.msra.mxu0 0.0
  %171 = vmatprep.subr.mxu0 0.0
  %172 = vmatpush1.xpose.msra.mxu0 %v141
  %173 = vmatprep.subr.mxu0 0.0
  %174 = vmatpush1.xpose.msra.mxu0 %v138
  %175 = vmatprep.subr.mxu0 0.0
  %176 = vmatpush2.xpose.msra.mxu0 0.0
  %177 = vmatprep.subr.mxu0 0.0
  %178 = vmatpush2.xpose.msra.mxu0 0.0
  %179 = vmatprep.subr.mxu0 0.0
  %180 = vmatpush2.xpose.msra.mxu0 0.0
  %181 = vmatprep.subr.mxu0 0.0
  %182 = vmatpush2.xpose.msra.mxu0 0.0
  %183 = vmatprep.subr.mxu0 0.0
  %184 = vmatpush2.xpose.msra.mxu0 0.0
  %185 = vmatprep.subr.mxu0 0.0
  %186 = vmatpush2.xpose.msra.mxu0 0.0
  %187 = vmatprep.subr.mxu0 0.0
  %188 = vmatpush2.xpose.msra.mxu0 0.0
  %189 = vmatprep.subr.mxu0 0.0
  %190 = vmatpush2.xpose.msra.mxu0 0.0
  %191 = vmatprep.subr.mxu0 0.0
  %192 = vmatpush2.xpose.msra.mxu0 0.0
  %193 = vmatprep.subr.mxu0 0.0
  %194 = vmatpush2.xpose.msra.mxu0 0.0
  %195 = vmatprep.subr.mxu0 0.0
  %196 = vmatpush2.xpose.msra.mxu0 0.0
  %197 = vmatprep.subr.mxu0 0.0
  %198 = vmatpush2.xpose.msra.mxu0 0.0
  %199 = vmatprep.subr.mxu0 0.0
  %200 = vmatpush2.xpose.msra.mxu0 0.0
  %201 = vmatprep.subr.mxu0 0.0
  %202 = vmatpush2.xpose.msra.mxu0 0.0
  %203 = vmatprep.subr.mxu0 0.0
  %204 = vmatpush2.xpose.msra.mxu0 0.0
  %205 = vmatprep.subr.mxu0 0.0
  %206 = vmatpush2.xpose.msra.mxu0 0.0
  %207 = vmatprep.mubr.f32.mxu0 0.0
  %208 = vmatmul.mubr.f32.gmra.mxu0 %v102
  %v209 = vpop.f32.mrf.mxu0
  %v210 = vadd.f32 %v43, %v209
  %v211 = vpop.f32.mrf.mxu0
  %212 = vmatprep.mubr.f32.mxu0 0.0
  %213 = vmatmul.mubr.f32.gmra.mxu0 %v105
  %v214 = vpop.f32.mrf.mxu0
  %v215 = vadd.f32 %v48, %v214
  %v216 = vpop.f32.mrf.mxu0
  %217 = vmatprep.mubr.f32.mxu0 0.0
  %218 = vmatmul.mubr.f32.gmra.mxu0 %v108
  %v219 = vpop.f32.mrf.mxu0
  %v220 = vadd.f32 %v53, %v219
  %v221 = vpop.f32.mrf.mxu0
  %222 = vmatprep.mubr.f32.mxu0 0.0
  %223 = vmatmul.mubr.f32.gmra.mxu0 %v111
  %v224 = vpop.f32.mrf.mxu0
  %v225 = vadd.f32 %v58, %v224
  %v226 = vpop.f32.mrf.mxu0
  %227 = vmatprep.mubr.f32.mxu0 0.0
  %228 = vmatmul.mubr.f32.gmra.mxu0 %v114
  %v229 = vpop.f32.mrf.mxu0
  %v230 = vadd.f32 %v63, %v229
  %v231 = vpop.f32.mrf.mxu0
  %232 = vmatprep.mubr.f32.mxu0 0.0
  %233 = vmatmul.mubr.f32.gmra.mxu0 %v117
  %v234 = vpop.f32.mrf.mxu0
  %v235 = vadd.f32 %v68, %v234
  %v236 = vpop.f32.mrf.mxu0
  %237 = vmatprep.mubr.f32.mxu0 0.0
  %238 = vmatmul.mubr.f32.gmra.mxu0 %v120
  %v239 = vpop.f32.mrf.mxu0
  %v240 = vadd.f32 %v73, %v239
  %v241 = vpop.f32.mrf.mxu0
  %242 = vmatprep.mubr.f32.mxu0 0.0
  %243 = vmatmul.mubr.f32.gmra.mxu0 %v123
  %v244 = vpop.f32.mrf.mxu0
  %v245 = vadd.f32 %v78, %v244
  %v246 = vpop.f32.mrf.mxu0
  %247 = vmatprep.mubr.f32.mxu0 0.0
  %248 = vmatmul.mubr.f32.gmra.mxu0 %v126
  %v249 = vpop.f32.mrf.mxu0
  %v250 = vadd.f32 %v83, %v249
  %v251 = vpop.f32.mrf.mxu0
  %252 = vmatprep.mubr.f32.mxu0 0.0
  %253 = vmatmul.mubr.f32.gmra.mxu0 %v129
  %v254 = vpop.f32.mrf.mxu0
  %v255 = vadd.f32 %v88, %v254
  %v256 = vpop.f32.mrf.mxu0
  %257 = vmatprep.mubr.f32.mxu0 0.0
  %258 = vmatmul.mubr.f32.gmra.mxu0 %v132
  %v259 = vpop.f32.mrf.mxu0
  %v260 = vadd.f32 %v93, %v259
  %v261 = vpop.f32.mrf.mxu0
  %262 = vmatprep.mubr.f32.mxu0 0.0
  %263 = vmatmul.mubr.f32.gmra.mxu0 %v135
  %v264 = vpop.f32.mrf.mxu0
  %v265 = vadd.f32 %v98, %v264
  %v266 = vpop.f32.mrf.mxu0
  %267 = vdwg.mxu0
  %v268 = vmul.f32 %v210, %v230
  %vm269 = vcmask 130048
  %v270 = vsel %vm269, %v268, 0.0
  %v271 = vrot.slane %v270, 4
  %v272 = vadd.f32 %v270, %v271
  %v273 = vrot.slane %v272, 2
  %v274 = vadd.f32 %v272, %v273
  %v275 = vrot.slane %v274, 1
  %v276 = vadd.f32 %v274, %v275
  %v277 = vsub.f32 %v276, 5.0
  %v278 = vmul.f32 %v277, 1.442695
  %v279 = vpow.pop %v278
  %v280 = vand.u32 2147483647, %v277
  %vm281 = vcmp.gt.f32.partialorder %v280, 5.0
  %v282 = vsel %vm281, 0.0, %v279
  %v283 = vmul.f32 %v210, %v235
  %v284 = vsel %vm269, %v283, 0.0
  %v285 = vrot.slane %v284, 4
  %v286 = vadd.f32 %v284, %v285
  %v287 = vrot.slane %v286, 2
  %v288 = vadd.f32 %v286, %v287
  %v289 = vrot.slane %v288, 1
  %v290 = vadd.f32 %v288, %v289
  %v291 = vsub.f32 %v290, 5.0
  %v292 = vmul.f32 %v291, 1.442695
  %v293 = vpow.pop %v292
  %v294 = vand.u32 2147483647, %v291
  %vm295 = vcmp.gt.f32.partialorder %v294, 5.0
  %v296 = vsel %vm295, 0.0, %v293
  %v297 = vmul.f32 %v210, %v240
  %v298 = vsel %vm269, %v297, 0.0
  %v299 = vrot.slane %v298, 4
  %v300 = vadd.f32 %v298, %v299
  %v301 = vrot.slane %v300, 2
  %v302 = vadd.f32 %v300, %v301
  %v303 = vrot.slane %v302, 1
  %v304 = vadd.f32 %v302, %v303
  %v305 = vsub.f32 %v304, 5.0
  %v306 = vmul.f32 %v305, 1.442695
  %v307 = vpow.pop %v306
  %v308 = vand.u32 2147483647, %v305
  %vm309 = vcmp.gt.f32.partialorder %v308, 5.0
  %v310 = vsel %vm309, 0.0, %v307
  %v311 = vmul.f32 %v210, %v245
  %v312 = vsel %vm269, %v311, 0.0
  %v313 = vrot.slane %v312, 4
  %v314 = vadd.f32 %v312, %v313
  %v315 = vrot.slane %v314, 2
  %v316 = vadd.f32 %v314, %v315
  %v317 = vrot.slane %v316, 1
  %v318 = vadd.f32 %v316, %v317
  %v319 = vsub.f32 %v318, 5.0
  %v320 = vmul.f32 %v319, 1.442695
  %v321 = vpow.pop %v320
  %v322 = vand.u32 2147483647, %v319
  %vm323 = vcmp.gt.f32.partialorder %v322, 5.0
  %v324 = vsel %vm323, 0.0, %v321
  %v325 = vadd.f32 %v282, %v296
  %v326 = vadd.f32 %v325, %v310
  %v327 = vadd.f32 %v326, %v324
  %v328 = vrcp.pop %v327
  %v329 = vmul.f32 1.0, %v328
  %v330 = vmul.f32 %v282, %v329
  %v331 = vmul.f32 %v330, %v250
  %v332 = vmul.f32 %v296, %v329
  %v333 = vmul.f32 %v332, %v255
  %v334 = vadd.f32 %v331, %v333
  %v335 = vmul.f32 %v310, %v329
  %v336 = vmul.f32 %v335, %v260
  %v337 = vadd.f32 %v334, %v336
  %v338 = vmul.f32 %v324, %v329
  %v339 = vmul.f32 %v338, %v265
  %v340 = vadd.f32 %v337, %v339
  %341 = vst.msk [vmem:[%s3] sm:$0xff] %vm269, %v340
  %v342 = vmul.f32 %v215, %v230
  %v343 = vsel %vm269, %v342, 0.0
  %v344 = vrot.slane %v343, 4
  %v345 = vadd.f32 %v343, %v344
  %v346 = vrot.slane %v345, 2
  %v347 = vadd.f32 %v345, %v346
  %v348 = vrot.slane %v347, 1
  %v349 = vadd.f32 %v347, %v348
  %v350 = vsub.f32 %v349, 5.0
  %v351 = vmul.f32 %v350, 1.442695
  %v352 = vpow.pop %v351
  %v353 = vand.u32 2147483647, %v350
  %vm354 = vcmp.gt.f32.partialorder %v353, 5.0
  %v355 = vsel %vm354, 0.0, %v352
  %v356 = vmul.f32 %v215, %v235
  %v357 = vsel %vm269, %v356, 0.0
  %v358 = vrot.slane %v357, 4
  %v359 = vadd.f32 %v357, %v358
  %v360 = vrot.slane %v359, 2
  %v361 = vadd.f32 %v359, %v360
  %v362 = vrot.slane %v361, 1
  %v363 = vadd.f32 %v361, %v362
  %v364 = vsub.f32 %v363, 5.0
  %v365 = vmul.f32 %v364, 1.442695
  %v366 = vpow.pop %v365
  %v367 = vand.u32 2147483647, %v364
  %vm368 = vcmp.gt.f32.partialorder %v367, 5.0
  %v369 = vsel %vm368, 0.0, %v366
  %v370 = vmul.f32 %v215, %v240
  %v371 = vsel %vm269, %v370, 0.0
  %v372 = vrot.slane %v371, 4
  %v373 = vadd.f32 %v371, %v372
  %v374 = vrot.slane %v373, 2
  %v375 = vadd.f32 %v373, %v374
  %v376 = vrot.slane %v375, 1
  %v377 = vadd.f32 %v375, %v376
  %v378 = vsub.f32 %v377, 5.0
  %v379 = vmul.f32 %v378, 1.442695
  %v380 = vpow.pop %v379
  %v381 = vand.u32 2147483647, %v378
  %vm382 = vcmp.gt.f32.partialorder %v381, 5.0
  %v383 = vsel %vm382, 0.0, %v380
  %v384 = vmul.f32 %v215, %v245
  %v385 = vsel %vm269, %v384, 0.0
  %v386 = vrot.slane %v385, 4
  %v387 = vadd.f32 %v385, %v386
  %v388 = vrot.slane %v387, 2
  %v389 = vadd.f32 %v387, %v388
  %v390 = vrot.slane %v389, 1
  %v391 = vadd.f32 %v389, %v390
  %v392 = vsub.f32 %v391, 5.0
  %v393 = vmul.f32 %v392, 1.442695
  %v394 = vpow.pop %v393
  %v395 = vand.u32 2147483647, %v392
  %vm396 = vcmp.gt.f32.partialorder %v395, 5.0
  %v397 = vsel %vm396, 0.0, %v394
  %v398 = vadd.f32 %v355, %v369
  %v399 = vadd.f32 %v398, %v383
  %v400 = vadd.f32 %v399, %v397
  %v401 = vrcp.pop %v400
  %v402 = vmul.f32 1.0, %v401
  %v403 = vmul.f32 %v355, %v402
  %v404 = vmul.f32 %v403, %v250
  %v405 = vmul.f32 %v369, %v402
  %v406 = vmul.f32 %v405, %v255
  %v407 = vadd.f32 %v404, %v406
  %v408 = vmul.f32 %v383, %v402
  %v409 = vmul.f32 %v408, %v260
  %v410 = vadd.f32 %v407, %v409
  %v411 = vmul.f32 %v397, %v402
  %v412 = vmul.f32 %v411, %v265
  %v413 = vadd.f32 %v410, %v412
  %414 = vst.msk [vmem:[%s3 + $0x8] sm:$0xff] %vm269, %v413
  %v415 = vmul.f32 %v220, %v230
  %v416 = vsel %vm269, %v415, 0.0
  %v417 = vrot.slane %v416, 4
  %v418 = vadd.f32 %v416, %v417
  %v419 = vrot.slane %v418, 2
  %v420 = vadd.f32 %v418, %v419
  %v421 = vrot.slane %v420, 1
  %v422 = vadd.f32 %v420, %v421
  %v423 = vsub.f32 %v422, 5.0
  %v424 = vmul.f32 %v423, 1.442695
  %v425 = vpow.pop %v424
  %v426 = vand.u32 2147483647, %v423
  %vm427 = vcmp.gt.f32.partialorder %v426, 5.0
  %v428 = vsel %vm427, 0.0, %v425
  %v429 = vmul.f32 %v220, %v235
  %v430 = vsel %vm269, %v429, 0.0
  %v431 = vrot.slane %v430, 4
  %v432 = vadd.f32 %v430, %v431
  %v433 = vrot.slane %v432, 2
  %v434 = vadd.f32 %v432, %v433
  %v435 = vrot.slane %v434, 1
  %v436 = vadd.f32 %v434, %v435
  %v437 = vsub.f32 %v436, 5.0
  %v438 = vmul.f32 %v437, 1.442695
  %v439 = vpow.pop %v438
  %v440 = vand.u32 2147483647, %v437
  %vm441 = vcmp.gt.f32.partialorder %v440, 5.0
  %v442 = vsel %vm441, 0.0, %v439
  %v443 = vmul.f32 %v220, %v240
  %v444 = vsel %vm269, %v443, 0.0
  %v445 = vrot.slane %v444, 4
  %v446 = vadd.f32 %v444, %v445
  %v447 = vrot.slane %v446, 2
  %v448 = vadd.f32 %v446, %v447
  %v449 = vrot.slane %v448, 1
  %v450 = vadd.f32 %v448, %v449
  %v451 = vsub.f32 %v450, 5.0
  %v452 = vmul.f32 %v451, 1.442695
  %v453 = vpow.pop %v452
  %v454 = vand.u32 2147483647, %v451
  %vm455 = vcmp.gt.f32.partialorder %v454, 5.0
  %v456 = vsel %vm455, 0.0, %v453
  %v457 = vmul.f32 %v220, %v245
  %v458 = vsel %vm269, %v457, 0.0
  %v459 = vrot.slane %v458, 4
  %v460 = vadd.f32 %v458, %v459
  %v461 = vrot.slane %v460, 2
  %v462 = vadd.f32 %v460, %v461
  %v463 = vrot.slane %v462, 1
  %v464 = vadd.f32 %v462, %v463
  %v465 = vsub.f32 %v464, 5.0
  %v466 = vmul.f32 %v465, 1.442695
  %v467 = vpow.pop %v466
  %v468 = vand.u32 2147483647, %v465
  %vm469 = vcmp.gt.f32.partialorder %v468, 5.0
  %v470 = vsel %vm469, 0.0, %v467
  %v471 = vadd.f32 %v428, %v442
  %v472 = vadd.f32 %v471, %v456
  %v473 = vadd.f32 %v472, %v470
  %v474 = vrcp.pop %v473
  %v475 = vmul.f32 1.0, %v474
  %v476 = vmul.f32 %v428, %v475
  %v477 = vmul.f32 %v476, %v250
  %v478 = vmul.f32 %v442, %v475
  %v479 = vmul.f32 %v478, %v255
  %v480 = vadd.f32 %v477, %v479
  %v481 = vmul.f32 %v456, %v475
  %v482 = vmul.f32 %v481, %v260
  %v483 = vadd.f32 %v480, %v482
  %v484 = vmul.f32 %v470, %v475
  %v485 = vmul.f32 %v484, %v265
  %v486 = vadd.f32 %v483, %v485
  %487 = vst.msk [vmem:[%s3 + $0x10] sm:$0xff] %vm269, %v486
  %v488 = vmul.f32 %v225, %v230
  %v489 = vsel %vm269, %v488, 0.0
  %v490 = vrot.slane %v489, 4
  %v491 = vadd.f32 %v489, %v490
  %v492 = vrot.slane %v491, 2
  %v493 = vadd.f32 %v491, %v492
  %v494 = vrot.slane %v493, 1
  %v495 = vadd.f32 %v493, %v494
  %v496 = vsub.f32 %v495, 5.0
  %v497 = vmul.f32 %v496, 1.442695
  %v498 = vpow.pop %v497
  %v499 = vand.u32 2147483647, %v496
  %vm500 = vcmp.gt.f32.partialorder %v499, 5.0
  %v501 = vsel %vm500, 0.0, %v498
  %v502 = vmul.f32 %v225, %v235
  %v503 = vsel %vm269, %v502, 0.0
  %v504 = vrot.slane %v503, 4
  %v505 = vadd.f32 %v503, %v504
  %v506 = vrot.slane %v505, 2
  %v507 = vadd.f32 %v505, %v506
  %v508 = vrot.slane %v507, 1
  %v509 = vadd.f32 %v507, %v508
  %v510 = vsub.f32 %v509, 5.0
  %v511 = vmul.f32 %v510, 1.442695
  %v512 = vpow.pop %v511
  %v513 = vand.u32 2147483647, %v510
  %vm514 = vcmp.gt.f32.partialorder %v513, 5.0
  %v515 = vsel %vm514, 0.0, %v512
  %v516 = vmul.f32 %v225, %v240
  %v517 = vsel %vm269, %v516, 0.0
  %v518 = vrot.slane %v517, 4
  %v519 = vadd.f32 %v517, %v518
  %v520 = vrot.slane %v519, 2
  %v521 = vadd.f32 %v519, %v520
  %v522 = vrot.slane %v521, 1
  %v523 = vadd.f32 %v521, %v522
  %v524 = vsub.f32 %v523, 5.0
  %v525 = vmul.f32 %v524, 1.442695
  %v526 = vpow.pop %v525
  %v527 = vand.u32 2147483647, %v524
  %vm528 = vcmp.gt.f32.partialorder %v527, 5.0
  %v529 = vsel %vm528, 0.0, %v526
  %v530 = vmul.f32 %v225, %v245
  %v531 = vsel %vm269, %v530, 0.0
  %v532 = vrot.slane %v531, 4
  %v533 = vadd.f32 %v531, %v532
  %v534 = vrot.slane %v533, 2
  %v535 = vadd.f32 %v533, %v534
  %v536 = vrot.slane %v535, 1
  %v537 = vadd.f32 %v535, %v536
  %v538 = vsub.f32 %v537, 5.0
  %v539 = vmul.f32 %v538, 1.442695
  %v540 = vpow.pop %v539
  %v541 = vand.u32 2147483647, %v538
  %vm542 = vcmp.gt.f32.partialorder %v541, 5.0
  %v543 = vsel %vm542, 0.0, %v540
  %v544 = vadd.f32 %v501, %v515
  %v545 = vadd.f32 %v544, %v529
  %v546 = vadd.f32 %v545, %v543
  %v547 = vrcp.pop %v546
  %v548 = vmul.f32 1.0, %v547
  %v549 = vmul.f32 %v501, %v548
  %v550 = vmul.f32 %v549, %v250
  %v551 = vmul.f32 %v515, %v548
  %v552 = vmul.f32 %v551, %v255
  %v553 = vadd.f32 %v550, %v552
  %v554 = vmul.f32 %v529, %v548
  %v555 = vmul.f32 %v554, %v260
  %v556 = vadd.f32 %v553, %v555
  %v557 = vmul.f32 %v543, %v548
  %v558 = vmul.f32 %v557, %v265
  %v559 = vadd.f32 %v556, %v558
  %560 = vst.msk [vmem:[%s3 + $0x18] sm:$0xff] %vm269, %v559
  // Predicated region
  $region14: #{tpu_custom_call.1} parent=0 // pred_check
    _
  $region15: #{tpu_custom_call.1} parent=0 // pred_check_branch
    %562 = sbr.rel (0) target = $region17
  $region16: #{tpu_custom_call.1} parent=0 // pred_region
    _
  $region17: #{tpu_custom_call.1} parent=0 // pred_fallthru
    _
  // Predicated region
  $region18: #{tpu_custom_call.1} parent=0 // pred_check
    _
  $region19: #{tpu_custom_call.1} parent=0 // pred_check_branch
    %564 = sbr.rel (0) target = $region21
  $region20: #{tpu_custom_call.1} parent=0 // pred_region
    _
  $region21: #{tpu_custom_call.1} parent=0 // pred_fallthru
    _

</llo_original>
